<compile_context>
chip_gen: v5e
topology: v5e:2x2
jax: 0.10.0
libtpu: 0.0.40
codegen_flags: <defaults>
</compile_context>

<pallas_src>
import jax
import jax.numpy as jnp
from jax.experimental import pallas as pl
from jax.experimental.pallas import tpu as pltpu

HIDDEN = 64
LARGE_BATCH_TILE = 1024  # sweep 512/1024/2048; >2048 f32 would need vmem_limit_bytes


def _round_up(x, m):
    return (x + m - 1) // m * m


def mlp_kernel(x_ref, w1_ref, w2_ref, w3_ref, w4_ref,
               b1_ref, b2_ref, b3_ref, b4_ref, o_ref):
    # Matmul operand dtype (bf16 or f32) comes from the weights; accumulation is f32.
    # Bias adds happen in f32 before the ReLU / re-cast, so the bf16 path loses no
    # accuracy on the bias term.
    cd = w1_ref.dtype
    h = x_ref[...].astype(cd)
    h = jnp.dot(h, w1_ref[...], preferred_element_type=jnp.float32)
    h = jnp.maximum(h + b1_ref[...], 0.0).astype(cd)
    h = jnp.dot(h, w2_ref[...], preferred_element_type=jnp.float32)
    h = jnp.maximum(h + b2_ref[...], 0.0).astype(cd)
    h = jnp.dot(h, w3_ref[...], preferred_element_type=jnp.float32)
    h = jnp.maximum(h + b3_ref[...], 0.0).astype(cd)
    o = jnp.dot(h, w4_ref[...], preferred_element_type=jnp.float32) + b4_ref[...]
    o_ref[...] = o.astype(o_ref.dtype)


def behavior_nn_forward(x, params, *, compute_dtype=jnp.bfloat16, out_dtype=jnp.float32):
    """x: (B, input_size) f32.  params: w1..w4 in (in,out) layout and b1..b4 of shape (1,out).

    compute_dtype: MXU operand dtype (bf16 default, f32 for strict accuracy).
    out_dtype: output array dtype (set bf16 to halve writeback if the consumer tolerates it).
    """
    B, input_size = x.shape
    output_size = params["w4"].shape[1]

    # Batch tiling: whole batch in one grid step when small, else 1024-row tiles
    # (per-grid-step overhead amortized; ~85% of HBM roofline vs ~63% at 256-row tiles).
    row_mult = 16 if compute_dtype == jnp.bfloat16 else 8   # bf16 packs 16 sublanes/vreg
    if B <= LARGE_BATCH_TILE:
        bm = _round_up(B, row_mult)
    else:
        bm = LARGE_BATCH_TILE
    grid = (pl.cdiv(B, bm),)

    # Feed x in the compute dtype so the dominant HBM read stream is bf16 on the bf16 path.
    xc = x.astype(compute_dtype)
    ws = tuple(params[f"w{i}"].astype(compute_dtype) for i in range(1, 5))
    bs = tuple(params[f"b{i}"].astype(jnp.float32) for i in range(1, 5))

    # Weights/biases: full-array blocks with constant index_maps -> fetched once, resident
    # across all grid steps (~70 KB total in bf16).
    full = lambda arr: pl.BlockSpec(arr.shape, lambda i: (0, 0))

    # Use both TensorCores (v7x) as soon as there are >= 2 batch tiles of work.
    semantics = ("parallel",) if grid[0] >= 2 else ("arbitrary",)

    # NOTE: if a ragged last batch tile occurs, its OOB rows are garbage but harmless:
    # rows are independent through the matmuls and the OOB output rows are masked on store.
    # TODO(synk): if xprof on v7x shows exposed x-tile DMA, add pipeline_mode=pl.Buffered(3)
    # on in_specs[0].
    out = pl.pallas_call(
        mlp_kernel,
        out_shape=jax.ShapeDtypeStruct((B, output_size), out_dtype),
        grid_spec=pltpu.PrefetchScalarGridSpec(
            num_scalar_prefetch=0,
            grid=grid,
            in_specs=[pl.BlockSpec((bm, input_size), lambda i: (i, 0))]  # unpadded x tile
                     + [full(w) for w in ws]                             # fc1..fc4 weights
                     + [full(b) for b in bs],                            # f32 biases
            out_specs=pl.BlockSpec((bm, output_size), lambda i: (i, 0)),  # true-width output
        ),
        compiler_params=pltpu.CompilerParams(dimension_semantics=semantics),
    )(xc, *ws, *bs)

    return out


def init_params(key, input_size, output_size, hidden=HIDDEN):
    """Deterministic PyTorch-style uniform(-1/sqrt(fan_in), 1/sqrt(fan_in)) init."""
    dims = [(input_size, hidden), (hidden, hidden), (hidden, hidden), (hidden, output_size)]
    params = {}
    for idx, (fin, fout) in enumerate(dims, start=1):
        key, kw, kb = jax.random.split(key, 3)
        bound = 1.0 / jnp.sqrt(float(fin))
        params[f"w{idx}"] = jax.random.uniform(kw, (fin, fout), jnp.float32, -bound, bound)
        params[f"b{idx}"] = jax.random.uniform(kb, (1, fout), jnp.float32, -bound, bound)
    return params


def reference_forward(x, p):
    h = jnp.maximum(x @ p["w1"] + p["b1"], 0.0)
    h = jnp.maximum(h @ p["w2"] + p["b2"], 0.0)
    h = jnp.maximum(h @ p["w3"] + p["b3"], 0.0)
    return h @ p["w4"] + p["b4"]


if __name__ == "__main__":
    key = jax.random.PRNGKey(0)
    batch, input_size, output_size = 16, 32, 8

    key, kx = jax.random.split(key)
    x = jax.random.normal(kx, (batch, input_size), jnp.float32)
    params = init_params(key, input_size, output_size)

    ref = reference_forward(x, params)

    # Default path: bf16 MXU operands, f32 accumulation + f32 bias adds.
    out_bf16 = jax.block_until_ready(behavior_nn_forward(x, params))
    assert out_bf16.shape == (batch, output_size)
    assert jnp.allclose(out_bf16, ref, atol=7.5e-2, rtol=5e-2), "bf16 kernel mismatch vs reference"

    # Strict-accuracy path: f32 MXU operands.
    out_f32 = jax.block_until_ready(behavior_nn_forward(x, params, compute_dtype=jnp.float32))
    assert out_f32.shape == (batch, output_size)
    assert jnp.allclose(out_f32, ref, atol=5e-3, rtol=5e-3), "f32 kernel mismatch vs reference"

    print("KERNEL_OK")
</pallas_src>

<mosaic_0001>
module attributes {stable_mosaic.version = 11 : i64} {
  func.func @mlp_kernel(%arg0: i32, %arg1: memref<16x32xbf16, #tpu.memory_space<vmem>>, %arg2: memref<32x64xbf16, #tpu.memory_space<vmem>>, %arg3: memref<64x64xbf16, #tpu.memory_space<vmem>>, %arg4: memref<64x64xbf16, #tpu.memory_space<vmem>>, %arg5: memref<64x8xbf16, #tpu.memory_space<vmem>>, %arg6: memref<1x64xf32, #tpu.memory_space<vmem>>, %arg7: memref<1x64xf32, #tpu.memory_space<vmem>>, %arg8: memref<1x64xf32, #tpu.memory_space<vmem>>, %arg9: memref<1x8xf32, #tpu.memory_space<vmem>>, %arg10: memref<16x8xf32, #tpu.memory_space<vmem>>) attributes {dimension_semantics = [#tpu.dimension_semantics<arbitrary>], iteration_bounds = array<i64: 1>, scalar_prefetch = 0 : i64, scratch_operands = 0 : i64, tpu.core_type = #tpu.core_type<tc>, window_params = [{transform_indices = @transform_0, window_bounds = array<i64: 16, 32>}, {pipeline_mode = #tpu.pipeline_mode<synchronous>, transform_indices = @transform_1, window_bounds = array<i64: 32, 64>}, {pipeline_mode = #tpu.pipeline_mode<synchronous>, transform_indices = @transform_2, window_bounds = array<i64: 64, 64>}, {pipeline_mode = #tpu.pipeline_mode<synchronous>, transform_indices = @transform_3, window_bounds = array<i64: 64, 64>}, {pipeline_mode = #tpu.pipeline_mode<synchronous>, transform_indices = @transform_4, window_bounds = array<i64: 64, 8>}, {pipeline_mode = #tpu.pipeline_mode<synchronous>, transform_indices = @transform_5, window_bounds = array<i64: 1, 64>}, {pipeline_mode = #tpu.pipeline_mode<synchronous>, transform_indices = @transform_6, window_bounds = array<i64: 1, 64>}, {pipeline_mode = #tpu.pipeline_mode<synchronous>, transform_indices = @transform_7, window_bounds = array<i64: 1, 64>}, {pipeline_mode = #tpu.pipeline_mode<synchronous>, transform_indices = @transform_8, window_bounds = array<i64: 1, 8>}, {transform_indices = @transform_9, window_bounds = array<i64: 16, 8>}]} {
    %c0 = arith.constant 0 : index
    %c0_0 = arith.constant 0 : index
    %0 = vector.load %arg1[%c0, %c0_0] : memref<16x32xbf16, #tpu.memory_space<vmem>>, vector<16x32xbf16>
    %c0_1 = arith.constant 0 : index
    %c0_2 = arith.constant 0 : index
    %1 = vector.load %arg2[%c0_1, %c0_2] : memref<32x64xbf16, #tpu.memory_space<vmem>>, vector<32x64xbf16>
    %cst = arith.constant dense<0.000000e+00> : vector<16x64xf32>
    %2 = tpu.matmul %0, %1, %cst {dimension_numbers = #tpu.dot_dimension_numbers<[1], [0], [0], [1], [0, 0, 1, 1], [], []>} : vector<16x32xbf16>, vector<32x64xbf16>, vector<16x64xf32> -> vector<16x64xf32>
    %c0_3 = arith.constant 0 : index
    %c0_4 = arith.constant 0 : index
    %3 = vector.load %arg6[%c0_3, %c0_4] : memref<1x64xf32, #tpu.memory_space<vmem>>, vector<1x64xf32>
    %4 = vector.broadcast %3 : vector<1x64xf32> to vector<16x64xf32>
    %5 = arith.addf %2, %4 : vector<16x64xf32>
    %cst_5 = arith.constant 0.000000e+00 : f32
    %6 = vector.broadcast %cst_5 : f32 to vector<16x64xf32>
    %7 = arith.maximumf %5, %6 : vector<16x64xf32>
    %8 = arith.truncf %7 : vector<16x64xf32> to vector<16x64xbf16>
    %c0_6 = arith.constant 0 : index
    %c0_7 = arith.constant 0 : index
    %9 = vector.load %arg3[%c0_6, %c0_7] : memref<64x64xbf16, #tpu.memory_space<vmem>>, vector<64x64xbf16>
    %cst_8 = arith.constant dense<0.000000e+00> : vector<16x64xf32>
    %10 = tpu.matmul %8, %9, %cst_8 {dimension_numbers = #tpu.dot_dimension_numbers<[1], [0], [0], [1], [0, 0, 1, 1], [], []>} : vector<16x64xbf16>, vector<64x64xbf16>, vector<16x64xf32> -> vector<16x64xf32>
    %c0_9 = arith.constant 0 : index
    %c0_10 = arith.constant 0 : index
    %11 = vector.load %arg7[%c0_9, %c0_10] : memref<1x64xf32, #tpu.memory_space<vmem>>, vector<1x64xf32>
    %12 = vector.broadcast %11 : vector<1x64xf32> to vector<16x64xf32>
    %13 = arith.addf %10, %12 : vector<16x64xf32>
    %cst_11 = arith.constant 0.000000e+00 : f32
    %14 = vector.broadcast %cst_11 : f32 to vector<16x64xf32>
    %15 = arith.maximumf %13, %14 : vector<16x64xf32>
    %16 = arith.truncf %15 : vector<16x64xf32> to vector<16x64xbf16>
    %c0_12 = arith.constant 0 : index
    %c0_13 = arith.constant 0 : index
    %17 = vector.load %arg4[%c0_12, %c0_13] : memref<64x64xbf16, #tpu.memory_space<vmem>>, vector<64x64xbf16>
    %cst_14 = arith.constant dense<0.000000e+00> : vector<16x64xf32>
    %18 = tpu.matmul %16, %17, %cst_14 {dimension_numbers = #tpu.dot_dimension_numbers<[1], [0], [0], [1], [0, 0, 1, 1], [], []>} : vector<16x64xbf16>, vector<64x64xbf16>, vector<16x64xf32> -> vector<16x64xf32>
    %c0_15 = arith.constant 0 : index
    %c0_16 = arith.constant 0 : index
    %19 = vector.load %arg8[%c0_15, %c0_16] : memref<1x64xf32, #tpu.memory_space<vmem>>, vector<1x64xf32>
    %20 = vector.broadcast %19 : vector<1x64xf32> to vector<16x64xf32>
    %21 = arith.addf %18, %20 : vector<16x64xf32>
    %cst_17 = arith.constant 0.000000e+00 : f32
    %22 = vector.broadcast %cst_17 : f32 to vector<16x64xf32>
    %23 = arith.maximumf %21, %22 : vector<16x64xf32>
    %24 = arith.truncf %23 : vector<16x64xf32> to vector<16x64xbf16>
    %c0_18 = arith.constant 0 : index
    %c0_19 = arith.constant 0 : index
    %25 = vector.load %arg5[%c0_18, %c0_19] : memref<64x8xbf16, #tpu.memory_space<vmem>>, vector<64x8xbf16>
    %cst_20 = arith.constant dense<0.000000e+00> : vector<16x8xf32>
    %26 = tpu.matmul %24, %25, %cst_20 {dimension_numbers = #tpu.dot_dimension_numbers<[1], [0], [0], [1], [0, 0, 1, 1], [], []>} : vector<16x64xbf16>, vector<64x8xbf16>, vector<16x8xf32> -> vector<16x8xf32>
    %c0_21 = arith.constant 0 : index
    %c0_22 = arith.constant 0 : index
    %27 = vector.load %arg9[%c0_21, %c0_22] : memref<1x8xf32, #tpu.memory_space<vmem>>, vector<1x8xf32>
    %28 = vector.broadcast %27 : vector<1x8xf32> to vector<16x8xf32>
    %29 = arith.addf %26, %28 : vector<16x8xf32>
    %c0_23 = arith.constant 0 : index
    %c0_24 = arith.constant 0 : index
    %30 = vector.load %arg10[%c0_23, %c0_24] : memref<16x8xf32, #tpu.memory_space<vmem>>, vector<16x8xf32>
    tpu.vector_store %arg10[%c0_23, %c0_24], %29 {strides = array<i32>} : memref<16x8xf32, #tpu.memory_space<vmem>>, vector<16x8xf32>,
    return
  }
  func.func @transform_0(%arg0: i32) -> (i32, i32) {
    %c0_i32 = arith.constant 0 : i32
    %c0_i32_0 = arith.constant 0 : i32
    return %arg0, %c0_i32 : i32, i32
  }
  func.func @transform_1(%arg0: i32) -> (i32, i32) {
    %c0_i32 = arith.constant 0 : i32
    %c0_i32_0 = arith.constant 0 : i32
    %c0_i32_1 = arith.constant 0 : i32
    return %c0_i32, %c0_i32_0 : i32, i32
  }
  func.func @transform_2(%arg0: i32) -> (i32, i32) {
    %c0_i32 = arith.constant 0 : i32
    %c0_i32_0 = arith.constant 0 : i32
    %c0_i32_1 = arith.constant 0 : i32
    return %c0_i32, %c0_i32_0 : i32, i32
  }
  func.func @transform_3(%arg0: i32) -> (i32, i32) {
    %c0_i32 = arith.constant 0 : i32
    %c0_i32_0 = arith.constant 0 : i32
    %c0_i32_1 = arith.constant 0 : i32
    return %c0_i32, %c0_i32_0 : i32, i32
  }
  func.func @transform_4(%arg0: i32) -> (i32, i32) {
    %c0_i32 = arith.constant 0 : i32
    %c0_i32_0 = arith.constant 0 : i32
    %c0_i32_1 = arith.constant 0 : i32
    return %c0_i32, %c0_i32_0 : i32, i32
  }
  func.func @transform_5(%arg0: i32) -> (i32, i32) {
    %c0_i32 = arith.constant 0 : i32
    %c0_i32_0 = arith.constant 0 : i32
    %c0_i32_1 = arith.constant 0 : i32
    return %c0_i32, %c0_i32_0 : i32, i32
  }
  func.func @transform_6(%arg0: i32) -> (i32, i32) {
    %c0_i32 = arith.constant 0 : i32
    %c0_i32_0 = arith.constant 0 : i32
    %c0_i32_1 = arith.constant 0 : i32
    return %c0_i32, %c0_i32_0 : i32, i32
  }
  func.func @transform_7(%arg0: i32) -> (i32, i32) {
    %c0_i32 = arith.constant 0 : i32
    %c0_i32_0 = arith.constant 0 : i32
    %c0_i32_1 = arith.constant 0 : i32
    return %c0_i32, %c0_i32_0 : i32, i32
  }
  func.func @transform_8(%arg0: i32) -> (i32, i32) {
    %c0_i32 = arith.constant 0 : i32
    %c0_i32_0 = arith.constant 0 : i32
    %c0_i32_1 = arith.constant 0 : i32
    return %c0_i32, %c0_i32_0 : i32, i32
  }
  func.func @transform_9(%arg0: i32) -> (i32, i32) {
    %c0_i32 = arith.constant 0 : i32
    %c0_i32_0 = arith.constant 0 : i32
    return %arg0, %c0_i32 : i32, i32
  }
}

</mosaic_0001>

<llo_original>
// kernel: tpu_custom_call.1
$region0: #{tpu_custom_call.1}
  #allocation0 [shape = 'u32[]', space=smem, size = 0x4, offset = 0x4, fixed_abs, tag = 'smem constant byte address 0x4 - core index']
  #allocation1 [shape = 'u32[72,128]{1,0:T(1,128)}', space=vmem, size = 0x9000, scoped, tag = 'internal scratch']
  %s0 = inlined_call_operand.hbm [shape: bf16[16,32], index: 0, kind: input, shape index: {}]
  %s1 = inlined_call_operand.hbm [shape: bf16[32,64], index: 1, kind: input, shape index: {}]
  %s2 = inlined_call_operand.vmem [shape: bf16[64,64], index: 2, kind: input, shape index: {}]
  %s3 = inlined_call_operand.hbm [shape: bf16[64,64], index: 3, kind: input, shape index: {}]
  %s4 = inlined_call_operand.vmem [shape: bf16[64,8], index: 4, kind: input, shape index: {}]
  %s5 = inlined_call_operand.vmem [shape: f32[1,64], index: 5, kind: input, shape index: {}]
  %s6 = inlined_call_operand.vmem [shape: f32[1,64], index: 6, kind: input, shape index: {}]
  %s7 = inlined_call_operand.vmem [shape: f32[1,64], index: 7, kind: input, shape index: {}]
  %s8 = inlined_call_operand.vmem [shape: f32[1,8], index: 8, kind: input, shape index: {}]
  %s9 = inlined_call_operand.vmem [shape: f32[16,8], index: 9, kind: output, shape index: {}]
  %s10 = sld [smem:[#allocation0]]
  $region58: #{tpu_custom_call.1} parent=0
    _
  %s12 = ssub.s32 1, %s10
  %s13 = scalar_select 0, %s12, %s10
  $region1: #{tpu_custom_call.1} parent=0
    #allocation2 [shape = 'u8[4096]{0}', space=vmem, size = 0x1000, scoped, tag = 'input window, operand 0, single buffered']
    #allocation3 [shape = 's32[1]{0}', space=sflag, size = 0x4, scoped, tag = 'scoped memory for tpu_custom_call.1']
    #allocation4 [shape = 'u8[8192]{0}', space=vmem, size = 0x2000, scoped, tag = 'input window, operand 1, single buffered']
    #allocation5 [shape = 's32[1]{0}', space=sflag, size = 0x4, scoped, tag = 'scoped memory for tpu_custom_call.1']
    #allocation6 [shape = 'u8[16384]{0}', space=vmem, size = 0x4000, scoped, tag = 'input window, operand 3, single buffered']
    %14 = vsyncpa [#allocation3], 0
    %15 = vsyncpa [#allocation5], 0
    // Predicated region
    $region2: #{tpu_custom_call.1} parent=1 // pred_check
      _
    $region3: #{tpu_custom_call.1} parent=1 // pred_check_branch
      %17 = sbr.rel (0) target = $region5
    $region4: #{tpu_custom_call.1} parent=1 // pred_region
      %19 = vsyncadd [#allocation3], 0
      %s20 = sshll.u32 %s0, 4
      %s21 = int_to_ptr.hbm [resolvable:$true] %s20
      %s22 = sshll.u32 [#allocation2], 4
      %s23 = int_to_ptr.vmem [resolvable:$true] %s22
      %28 = dma.hbm_to_vmem [thread:$0]  %s21, 128, %s23, [#allocation3], 64, 64, 4
    $region5: #{tpu_custom_call.1} parent=1 // pred_fallthru
      _
    // Predicated region
    $region6: #{tpu_custom_call.1} parent=1 // pred_check
      _
    $region7: #{tpu_custom_call.1} parent=1 // pred_check_branch
      %30 = sbr.rel (0) target = $region9
    $region8: #{tpu_custom_call.1} parent=1 // pred_region
      %32 = vsyncadd [#allocation5], 0
      %s33 = sshll.u32 %s1, 4
      %s34 = int_to_ptr.hbm [resolvable:$true] %s33
      %s35 = sshll.u32 [#allocation4], 4
      %s36 = int_to_ptr.vmem [resolvable:$true] %s35
      %41 = dma.hbm_to_vmem [thread:$0]  %s34, 256, %s36, [#allocation5], 64, 64, 4
    $region9: #{tpu_custom_call.1} parent=1 // pred_fallthru
      _
    // Predicated region
    $region10: #{tpu_custom_call.1} parent=1 // pred_check
      _
    $region11: #{tpu_custom_call.1} parent=1 // pred_check_branch
      %43 = sbr.rel (0) target = $region13
    $region12: #{tpu_custom_call.1} parent=1 // pred_region
      _
    $region13: #{tpu_custom_call.1} parent=1 // pred_fallthru
      _
    // Predicated region
    $region14: #{tpu_custom_call.1} parent=1 // pred_check
      _
    $region15: #{tpu_custom_call.1} parent=1 // pred_check_branch
      %45 = sbr.rel (0) target = $region17
    $region16: #{tpu_custom_call.1} parent=1 // pred_region
      %47 = vsyncadd [#allocation5], 0
      %s48 = sshll.u32 %s3, 4
      %s49 = int_to_ptr.hbm [resolvable:$true] %s48
      %s50 = sshll.u32 [#allocation6], 4
      %s51 = int_to_ptr.vmem [resolvable:$true] %s50
      %56 = dma.hbm_to_vmem [thread:$0]  %s49, 512, %s51, [#allocation5], 64, 64, 4
    $region17: #{tpu_custom_call.1} parent=1 // pred_fallthru
      _
    // Predicated region
    $region18: #{tpu_custom_call.1} parent=1 // pred_check
      _
    $region19: #{tpu_custom_call.1} parent=1 // pred_check_branch
      %58 = sbr.rel (0) target = $region21
    $region20: #{tpu_custom_call.1} parent=1 // pred_region
      _
    $region21: #{tpu_custom_call.1} parent=1 // pred_fallthru
      _
    // Predicated region
    $region22: #{tpu_custom_call.1} parent=1 // pred_check
      _
    $region23: #{tpu_custom_call.1} parent=1 // pred_check_branch
      %60 = sbr.rel (0) target = $region25
    $region24: #{tpu_custom_call.1} parent=1 // pred_region
      _
    $region25: #{tpu_custom_call.1} parent=1 // pred_fallthru
      _
    // Predicated region
    $region26: #{tpu_custom_call.1} parent=1 // pred_check
      _
    $region27: #{tpu_custom_call.1} parent=1 // pred_check_branch
      %62 = sbr.rel (0) target = $region29
    $region28: #{tpu_custom_call.1} parent=1 // pred_region
      _
    $region29: #{tpu_custom_call.1} parent=1 // pred_fallthru
      _
    // Predicated region
    $region30: #{tpu_custom_call.1} parent=1 // pred_check
      _
    $region31: #{tpu_custom_call.1} parent=1 // pred_check_branch
      %64 = sbr.rel (0) target = $region33
    $region32: #{tpu_custom_call.1} parent=1 // pred_region
      _
    $region33: #{tpu_custom_call.1} parent=1 // pred_fallthru
      _
    // Predicated region
    $region34: #{tpu_custom_call.1} parent=1 // pred_check
      _
    $region35: #{tpu_custom_call.1} parent=1 // pred_check_branch
      %66 = sbr.rel (0) target = $region37
    $region36: #{tpu_custom_call.1} parent=1 // pred_region
      _
    $region37: #{tpu_custom_call.1} parent=1 // pred_fallthru
      _
    // Predicated region
    $region38: #{tpu_custom_call.1} parent=1 // pred_check
      _
    $region39: #{tpu_custom_call.1} parent=1 // pred_check_branch
      %68 = sbr.rel (0) target = $region41
    $region40: #{tpu_custom_call.1} parent=1 // pred_region
      %70 = dma.done [#allocation3], 128
    $region41: #{tpu_custom_call.1} parent=1 // pred_fallthru
      _
    // Predicated region
    $region42: #{tpu_custom_call.1} parent=1 // pred_check
      _
    $region43: #{tpu_custom_call.1} parent=1 // pred_check_branch
      %72 = sbr.rel (0) target = $region45
    $region44: #{tpu_custom_call.1} parent=1 // pred_region
      %74 = dma.done [#allocation5], 256
    $region45: #{tpu_custom_call.1} parent=1 // pred_fallthru
      _
    // Predicated region
    $region46: #{tpu_custom_call.1} parent=1 // pred_check
      _
    $region47: #{tpu_custom_call.1} parent=1 // pred_check_branch
      %76 = sbr.rel (0) target = $region49
    $region48: #{tpu_custom_call.1} parent=1 // pred_region
      %78 = dma.done [#allocation5], 512
    $region49: #{tpu_custom_call.1} parent=1 // pred_fallthru
      _
    %v80 = vld [vmem:[#allocation2] sm:$0xf]
    %v81 = vld [vmem:[#allocation2 + $0x4] sm:$0xf]
    %v82 = vld [vmem:[#allocation4] sm:$0xf]
    %v83 = vld [vmem:[#allocation4 + $0x4] sm:$0xf]
    %v84 = vld [vmem:[#allocation4 + $0x8] sm:$0xf]
    %v85 = vld [vmem:[#allocation4 + $0xc] sm:$0xf]
    %v86 = vld [vmem:[%s5] sm:$0x1]
    %v88 = vperm.slane %v86, 0
    %v92 = vunpack.c.l.b16 %v80
    %v93 = vunpack.c.l.b16 %v81
    %v94 = vpack.c.b16 %v93, %v92
    %v99 = vunpack.c.l.b16 %v82
    %v100 = vunpack.c.l.b16 %v83
    %v101 = vunpack.c.l.b16 %v84
    %v102 = vunpack.c.l.b16 %v85
    %v103 = vpack.c.b16 %v100, %v99
    %v104 = vpack.c.b16 %v102, %v101
    %vm107 = vcmask 261120
    %v109 = vsel %vm107, %v94, 0
    %111 = vmatpush.bf16.msra.mxu0 0
    %112 = vmatpush.bf16.msra.mxu0 0
    %113 = vmatpush.bf16.msra.mxu0 0
    %114 = vmatpush.bf16.msra.mxu0 0
    %115 = vmatpush.bf16.msra.mxu0 0
    %116 = vmatpush.bf16.msra.mxu0 0
    %117 = vmatpush.bf16.msra.mxu0 %v104
    %118 = vmatpush.bf16.msra.mxu0 %v103
    %119 = vmatmul.bf16.gmra.mxu0 %v109
    %v120 = vpop.f32.mrf.mxu0
    %v121 = vadd.f32 %v88, %v120
    %v122 = vpop.f32.mrf.mxu0
    %v123 = vadd.f32 %v88, %v122
    %124 = vdwg.mxu0
    %v125 = vmax.f32 %v121, 0.0
    %v126 = vmax.f32 %v123, 0.0
    %v127 = vpack.c.bf16 %v126, %v125
    %v128 = vld [vmem:[%s2] sm:$0xf]
    %v129 = vld [vmem:[%s2 + $0x4] sm:$0xf]
    %v130 = vld [vmem:[%s2 + $0x8] sm:$0xf]
    %v131 = vld [vmem:[%s2 + $0xc] sm:$0xf]
    %v132 = vld [vmem:[%s2 + $0x10] sm:$0xf]
    %v133 = vld [vmem:[%s2 + $0x14] sm:$0xf]
    %v134 = vld [vmem:[%s2 + $0x18] sm:$0xf]
    %v135 = vld [vmem:[%s2 + $0x1c] sm:$0xf]
    %v136 = vld [vmem:[%s6] sm:$0x1]
    %v138 = vperm.slane %v136, 0
    %v148 = vunpack.c.l.b16 %v128
    %v149 = vunpack.c.l.b16 %v129
    %v150 = vunpack.c.l.b16 %v130
    %v151 = vunpack.c.l.b16 %v131
    %v152 = vunpack.c.l.b16 %v132
    %v153 = vunpack.c.l.b16 %v133
    %v154 = vunpack.c.l.b16 %v134
    %v155 = vunpack.c.l.b16 %v135
    %v156 = vpack.c.b16 %v149, %v148
    %v157 = vpack.c.b16 %v151, %v150
    %v158 = vpack.c.b16 %v153, %v152
    %v159 = vpack.c.b16 %v155, %v154
    %vm164 = vcmask 523264
    %v166 = vsel %vm164, %v127, 0
    %168 = vmatpush.bf16.msra.mxu0 0
    %169 = vmatpush.bf16.msra.mxu0 0
    %170 = vmatpush.bf16.msra.mxu0 0
    %171 = vmatpush.bf16.msra.mxu0 0
    %172 = vmatpush.bf16.msra.mxu0 %v159
    %173 = vmatpush.bf16.msra.mxu0 %v158
    %174 = vmatpush.bf16.msra.mxu0 %v157
    %175 = vmatpush.bf16.msra.mxu0 %v156
    %176 = vmatmul.bf16.gmra.mxu0 %v166
    %v177 = vpop.f32.mrf.mxu0
    %v178 = vadd.f32 %v138, %v177
    %v179 = vpop.f32.mrf.mxu0
    %v180 = vadd.f32 %v138, %v179
    %181 = vdwg.mxu0
    %v182 = vmax.f32 %v178, 0.0
    %v183 = vmax.f32 %v180, 0.0
    %v184 = vpack.c.bf16 %v183, %v182
    %v185 = vld [vmem:[#allocation6] sm:$0xf]
    %v186 = vld [vmem:[#allocation6 + $0x4] sm:$0xf]
    %v187 = vld [vmem:[#allocation6 + $0x8] sm:$0xf]
    %v188 = vld [vmem:[#allocation6 + $0xc] sm:$0xf]
    %v189 = vld [vmem:[#allocation6 + $0x10] sm:$0xf]
    %v190 = vld [vmem:[#allocation6 + $0x14] sm:$0xf]
    %v191 = vld [vmem:[#allocation6 + $0x18] sm:$0xf]
    %v192 = vld [vmem:[#allocation6 + $0x1c] sm:$0xf]
    %v193 = vld [vmem:[%s7] sm:$0x1]
    %v195 = vperm.slane %v193, 0
    %v205 = vunpack.c.l.b16 %v185
    %v206 = vunpack.c.l.b16 %v186
    %v207 = vunpack.c.l.b16 %v187
    %v208 = vunpack.c.l.b16 %v188
    %v209 = vunpack.c.l.b16 %v189
    %v210 = vunpack.c.l.b16 %v190
    %v211 = vunpack.c.l.b16 %v191
    %v212 = vunpack.c.l.b16 %v192
    %v213 = vpack.c.b16 %v206, %v205
    %v214 = vpack.c.b16 %v208, %v207
    %v215 = vpack.c.b16 %v210, %v209
    %v216 = vpack.c.b16 %v212, %v211
    %v222 = vsel %vm164, %v184, 0
    %224 = vmatpush.bf16.msra.mxu0 0
    %225 = vmatpush.bf16.msra.mxu0 0
    %226 = vmatpush.bf16.msra.mxu0 0
    %227 = vmatpush.bf16.msra.mxu0 0
    %228 = vmatpush.bf16.msra.mxu0 %v216
    %229 = vmatpush.bf16.msra.mxu0 %v215
    %230 = vmatpush.bf16.msra.mxu0 %v214
    %231 = vmatpush.bf16.msra.mxu0 %v213
    %232 = vmatmul.bf16.gmra.mxu0 %v222
    %v233 = vpop.f32.mrf.mxu0
    %v234 = vadd.f32 %v195, %v233
    %v235 = vpop.f32.mrf.mxu0
    %v236 = vadd.f32 %v195, %v235
    %237 = vdwg.mxu0
    %v238 = vmax.f32 %v234, 0.0
    %v239 = vmax.f32 %v236, 0.0
    %v240 = vpack.c.bf16 %v239, %v238
    %v241 = vld [vmem:[%s4] sm:$0xf]
    %v242 = vld [vmem:[%s4 + $0x4] sm:$0xf]
    %v243 = vld [vmem:[%s4 + $0x8] sm:$0xf]
    %v244 = vld [vmem:[%s4 + $0xc] sm:$0xf]
    %v245 = vld [vmem:[%s4 + $0x10] sm:$0xf]
    %v246 = vld [vmem:[%s4 + $0x14] sm:$0xf]
    %v247 = vld [vmem:[%s4 + $0x18] sm:$0xf]
    %v248 = vld [vmem:[%s4 + $0x1c] sm:$0xf]
    %v249 = vld [vmem:[%s8] sm:$0x1]
    %v251 = vperm.slane %v249, 0
    %v261 = vunpack.c.l.b16 %v241
    %v262 = vunpack.c.l.b16 %v242
    %v263 = vunpack.c.l.b16 %v243
    %v264 = vunpack.c.l.b16 %v244
    %v265 = vunpack.c.l.b16 %v245
    %v266 = vunpack.c.l.b16 %v246
    %v267 = vunpack.c.l.b16 %v247
    %v268 = vunpack.c.l.b16 %v248
    %v269 = vpack.c.b16 %v262, %v261
    %v270 = vpack.c.b16 %v264, %v263
    %v271 = vpack.c.b16 %v266, %v265
    %v272 = vpack.c.b16 %v268, %v267
    %v278 = vsel %vm164, %v240, 0
    %280 = vmatpush.bf16.msra.mxu0 0
    %281 = vmatpush.bf16.msra.mxu0 0
    %282 = vmatpush.bf16.msra.mxu0 0
    %283 = vmatpush.bf16.msra.mxu0 0
    %284 = vmatpush.bf16.msra.mxu0 %v272
    %285 = vmatpush.bf16.msra.mxu0 %v271
    %286 = vmatpush.bf16.msra.mxu0 %v270
    %287 = vmatpush.bf16.msra.mxu0 %v269
    %288 = vmatmul.bf16.gmra.mxu0 %v278
    %v289 = vpop.f32.mrf.mxu0
    %v290 = vadd.f32 %v251, %v289
    %v291 = vpop.f32.mrf.mxu0
    %v292 = vadd.f32 %v251, %v291
    %293 = vdwg.mxu0
    %vm294 = vcmask 64512
    %295 = vst.msk [vmem:[%s9] sm:$0xff] %vm294, %v290
    %296 = vst.msk [vmem:[%s9 + $0x8] sm:$0xff] %vm294, %v292
    // Predicated region
    $region50: #{tpu_custom_call.1} parent=1 // pred_check
      _
    $region51: #{tpu_custom_call.1} parent=1 // pred_check_branch
      %298 = sbr.rel (0) target = $region53
    $region52: #{tpu_custom_call.1} parent=1 // pred_region
      _
    $region53: #{tpu_custom_call.1} parent=1 // pred_fallthru
      _
    // Predicated region
    $region54: #{tpu_custom_call.1} parent=1 // pred_check
      _
    $region55: #{tpu_custom_call.1} parent=1 // pred_check_branch
      %300 = sbr.rel (0) target = $region57
    $region56: #{tpu_custom_call.1} parent=1 // pred_region
      _
    $region57: #{tpu_custom_call.1} parent=1 // pred_fallthru
      _
    %301 = vsyncpa [#allocation3], 1
    %302 = vsyncpa [#allocation5], 1

</llo_original>
